<compile_context>
chip_gen: v6e
topology: v6e:2x2x1
jax: 0.10.0
libtpu: 0.0.40
codegen_flags: <defaults>
</compile_context>

<pallas_src>
import jax
import jax.numpy as jnp
from jax import lax
from jax.experimental import pallas as pl
from jax.experimental.pallas import tpu as pltpu


_LANES = 512          # lane-dense last dim (4 * 128)
_EPS = 1e-6


def _cdiv(a: int, b: int) -> int:
    return -(-a // b)


def _round_up(x: int, m: int) -> int:
    return _cdiv(x, m) * m


def _tpu_vmem_bytes() -> int:
    try:
        return int(pltpu.get_tpu_info().vmem_capacity_bytes)
    except Exception:
        return 64 << 20          # conservative default (v7x per-core VMEM)


_VMEM_CAP = _tpu_vmem_bytes()
# Per-grid-step row targets (one row = 512 lanes).
_SINGLE_TARGET_ROWS = 2048                                        # 4 MiB/input/step (f32)
_FUSED_TARGET_ROWS = 2048 if _VMEM_CAP >= (100 << 20) else 1024   # 64 MiB parts stay small


# ------------------------------- planning ---------------------------------- #

def _group_for(*arrays) -> int:
    """Sublane-group granularity: 8 rows for f32, 16 for bf16, 32 for int8."""
    itemsize = min(jnp.dtype(a.dtype).itemsize for a in arrays)
    return max(8, 32 // max(1, itemsize))


def _plan(rows: int, group: int, target_rows: int):
    """Choose (tile_rows, num_blocks, slab_rows) for a (slab_rows, 512) slab.

    tile_rows is a multiple of `group`, balanced across blocks, and never
    larger than the slab (so only the last block can be partial)."""
    if rows <= group:
        return group, 1, group                      # tiny input: one group-sized block
    num_blocks = max(_cdiv(rows, target_rows), 2)   # >=2 blocks -> both v7x TCs busy
    tile_rows = _round_up(_cdiv(rows, num_blocks), group)
    tile_rows = max(min(tile_rows, (rows // group) * group), group)
    num_blocks = _cdiv(rows, tile_rows)
    return tile_rows, num_blocks, rows              # no row padding of the slab


def _to_slab(x: jax.Array, slab_rows: int) -> jax.Array:
    """Flatten x into a (slab_rows, 512) lane-dense slab (free reshape when aligned)."""
    flat = x.reshape(-1)
    need = slab_rows * _LANES
    if flat.size != need:
        # TODO(synk): this pad is one extra HBM copy; it is only hit for tiny
        # inputs (< 1 group) or element counts not a multiple of 512.
        flat = jnp.pad(flat, (0, need - flat.size))
    return flat.reshape(slab_rows, _LANES)


def _vmem_limit(in_itemsizes, tile_rows: int, n_outputs: int) -> int:
    need = 2 * tile_rows * _LANES * sum(in_itemsizes)   # double-buffered inputs
    need += 2 * n_outputs * 8 * _LANES * 4               # double-buffered outputs
    need += 8 << 20                                      # headroom for temporaries
    return int(min(need, (_VMEM_CAP * 3) // 4))


# ----------------------------- Pallas kernels ------------------------------ #

def _group_ssd(a_ref, b_ref, r0, group, mask):
    """(group, 512) squared-diff folded to an (8, 512) partial; VPU-only."""
    a = a_ref[pl.ds(r0, group), :].astype(jnp.float32)
    b = b_ref[pl.ds(r0, group), :].astype(jnp.float32)
    d = a - b
    if mask is not None:
        d = jnp.where(mask, d, 0.0)
    dd = d * d
    if group == 8:
        return dd
    part = dd[0:8, :]
    for k in range(1, group // 8):
        part = part + dd[k * 8:(k + 1) * 8, :]
    return part


def _make_ssd_kernel(tile_rows, group, total_rows, needs_mask):
    n_groups = tile_rows // group
    unroll = min(8, n_groups)

    def kernel(a_ref, b_ref, o_ref):
        base = pl.program_id(0) * tile_rows
        row_iota = (lax.broadcasted_iota(jnp.int32, (group, _LANES), 0)
                    if needs_mask else None)

        def body(g, acc):
            r0 = pl.multiple_of(g * group, group)
            mask = (row_iota < (total_rows - base - r0)) if needs_mask else None
            return acc + _group_ssd(a_ref, b_ref, r0, group, mask)

        acc = lax.fori_loop(0, n_groups, body,
                            jnp.zeros((8, _LANES), jnp.float32), unroll=unroll)
        o_ref[...] = acc

    return kernel


def _make_fused_kernel(tile_rows, group, total_rows, needs_mask):
    n_groups = tile_rows // group
    unroll = min(4, n_groups)

    def kernel(a_ref, b_ref, c_ref, d_ref, o0_ref, o1_ref):
        base = pl.program_id(0) * tile_rows
        row_iota = (lax.broadcasted_iota(jnp.int32, (group, _LANES), 0)
                    if needs_mask else None)

        def body(g, carry):
            acc0, acc1 = carry
            r0 = pl.multiple_of(g * group, group)
            mask = (row_iota < (total_rows - base - r0)) if needs_mask else None
            acc0 = acc0 + _group_ssd(a_ref, b_ref, r0, group, mask)
            acc1 = acc1 + _group_ssd(c_ref, d_ref, r0, group, mask)
            return acc0, acc1

        z = jnp.zeros((8, _LANES), jnp.float32)
        acc0, acc1 = lax.fori_loop(0, n_groups, body, (z, z), unroll=unroll)
        o0_ref[...] = acc0
        o1_ref[...] = acc1

    return kernel


# ----------------------------- Pallas wrappers ------------------------------ #

def _sum_sq_diff(a: jax.Array, b: jax.Array) -> jax.Array:
    """sum((a - b)^2) over all elements via a tiled, parallel Pallas reduction."""
    assert a.size == b.size, (a.shape, b.shape)
    n = int(a.size)
    group = _group_for(a, b)
    rows = max(1, _cdiv(n, _LANES))
    tile_rows, num_blocks, slab_rows = _plan(rows, group, _SINGLE_TARGET_ROWS)
    needs_mask = (num_blocks * tile_rows != slab_rows)
    a2 = _to_slab(a, slab_rows)
    b2 = _to_slab(b, slab_rows)

    in_spec = pl.BlockSpec((tile_rows, _LANES), lambda i: (i, 0))
    out_spec = pl.BlockSpec((8, _LANES), lambda i: (i, 0))
    itemsizes = [jnp.dtype(a.dtype).itemsize, jnp.dtype(b.dtype).itemsize]

    partials = pl.pallas_call(
        _make_ssd_kernel(tile_rows, group, slab_rows, needs_mask),
        out_shape=jax.ShapeDtypeStruct((num_blocks * 8, _LANES), jnp.float32),
        grid_spec=pltpu.PrefetchScalarGridSpec(
            num_scalar_prefetch=0,
            grid=(num_blocks,),
            in_specs=[in_spec, in_spec],
            out_specs=out_spec,
        ),
        compiler_params=pltpu.CompilerParams(
            dimension_semantics=("parallel",),
            vmem_limit_bytes=_vmem_limit(itemsizes, tile_rows, 1),
        ),
    )(a2, b2)
    return jnp.sum(partials)


def _fused_sum_sq_diff(a, b, c, d):
    """(sum((a-b)^2), sum((c-d)^2)) in a single grid sweep (requires a.size==c.size)."""
    assert a.size == b.size and c.size == d.size and a.size == c.size
    n = int(a.size)
    group = _group_for(a, b, c, d)
    rows = max(1, _cdiv(n, _LANES))
    tile_rows, num_blocks, slab_rows = _plan(rows, group, _FUSED_TARGET_ROWS)
    needs_mask = (num_blocks * tile_rows != slab_rows)
    slabs = [_to_slab(x, slab_rows) for x in (a, b, c, d)]

    in_spec = pl.BlockSpec((tile_rows, _LANES), lambda i: (i, 0))
    out_spec = pl.BlockSpec((8, _LANES), lambda i: (i, 0))
    out_sds = jax.ShapeDtypeStruct((num_blocks * 8, _LANES), jnp.float32)
    itemsizes = [jnp.dtype(x.dtype).itemsize for x in (a, b, c, d)]

    p0, p1 = pl.pallas_call(
        _make_fused_kernel(tile_rows, group, slab_rows, needs_mask),
        out_shape=(out_sds, out_sds),
        grid_spec=pltpu.PrefetchScalarGridSpec(
            num_scalar_prefetch=0,
            grid=(num_blocks,),
            in_specs=[in_spec, in_spec, in_spec, in_spec],
            out_specs=(out_spec, out_spec),
        ),
        compiler_params=pltpu.CompilerParams(
            dimension_semantics=("parallel",),
            vmem_limit_bytes=_vmem_limit(itemsizes, tile_rows, 2),
        ),
    )(*slabs)
    return jnp.sum(p0), jnp.sum(p1)


def _rmse(a: jax.Array, b: jax.Array, eps: float = _EPS) -> jax.Array:
    """sqrt(mean((a-b)^2) + eps) — matches th.sqrt(th.mean((a-b)**2) + eps)."""
    return jnp.sqrt(_sum_sq_diff(a, b) / jnp.float32(a.size) + jnp.float32(eps))


# --------------------------- LossInterface in JAX -------------------------- #

def _default_sp_loss(target, sims):
    # TODO(synk): sp_loss is an injected callable in the original module; this
    # is a deterministic synthetic stand-in (RMSE via the same Pallas kernel).
    return _rmse(target, sims)


class LossInterface:
    def __init__(self, sp_loss, lname, spix_target, mix_alpha):
        self._default_sp = sp_loss is None
        self.sp_loss = sp_loss if sp_loss is not None else _default_sp_loss
        self.lname = lname
        self.spix_target = spix_target
        self.mix_alpha = mix_alpha

    def _spix_target_tensor(self, img, seg):
        if self.spix_target == "seg":
            return seg
        elif self.spix_target == "pix":
            return img
        else:
            raise ValueError(f"Uknown target [{self.spix_target}]")

    def spix_loss(self, img, seg, sims):
        return self.sp_loss(self._spix_target_tensor(img, seg), sims)

    def __call__(self, img, seg, deno=None, sims=None):
        if self.lname == "spix":
            return self.spix_loss(img, seg, sims)
        elif self.lname == "deno":
            return _rmse(img, deno)
        elif self.lname == "deno+spix":
            if self._default_sp and img.size == self._spix_target_tensor(img, seg).size:
                # Fused path: both SSD reductions in one pallas_call sweep.
                t = self._spix_target_tensor(img, seg)
                ssd0, ssd1 = _fused_sum_sq_diff(img, deno, t, sims)
                loss0 = jnp.sqrt(ssd0 / jnp.float32(img.size) + jnp.float32(_EPS))
                loss1 = jnp.sqrt(ssd1 / jnp.float32(t.size) + jnp.float32(_EPS))
            else:
                loss0 = _rmse(img, deno)
                loss1 = self.spix_loss(img, seg, sims)
            return self.mix_alpha * loss0 + (1.0 - self.mix_alpha) * loss1
        else:
            raise ValueError(f"Uknown lname [{self.lname}]")


# TODO(synk): no custom_vjp is defined; only the forward pass is implemented.


# ---------------------------------- main ----------------------------------- #

if __name__ == "__main__":
    key = jax.random.PRNGKey(0)
    k_img, k_deno, k_seg, k_sims = jax.random.split(key, 4)

    eps = 1e-6

    # --- small NCHW case (single block, fused 'deno+spix' path) ---
    B, C, H, W = 2, 4, 16, 16
    img = jax.random.normal(k_img, (B, C, H, W), dtype=jnp.float32)
    deno = img + 0.1 * jax.random.normal(k_deno, (B, C, H, W), dtype=jnp.float32)
    seg = jax.random.normal(k_seg, (B, C, H, W), dtype=jnp.float32)
    sims = jax.random.normal(k_sims, (B, C, H, W), dtype=jnp.float32)

    ref0 = jnp.sqrt(jnp.mean((img - deno) ** 2) + eps)
    ref1 = jnp.sqrt(jnp.mean((seg - sims) ** 2) + eps)
    ref = 0.7 * ref0 + 0.3 * ref1

    loss_fn = LossInterface(sp_loss=None, lname="deno+spix",
                            spix_target="seg", mix_alpha=0.7)
    loss = jax.block_until_ready(loss_fn(img, seg, deno=deno, sims=sims))
    assert jnp.allclose(loss, ref, rtol=1e-5, atol=1e-5), (loss, ref)

    # --- 'deno' branch (single-pair kernel) ---
    loss_deno = jax.block_until_ready(
        LossInterface(None, "deno", "seg", 0.0)(img, seg, deno=deno))
    assert jnp.allclose(loss_deno, ref0, rtol=1e-5, atol=1e-5), (loss_deno, ref0)

    # --- 'spix' branch with a ragged shape (exercises the lane-pad fallback) ---
    seg_r = jax.random.normal(k_seg, (2, 3, 17, 19), dtype=jnp.float32)
    sims_r = jax.random.normal(k_sims, (2, 3, 17, 19), dtype=jnp.float32)
    loss_spix = jax.block_until_ready(
        LossInterface(None, "spix", "seg", 0.0)(img, seg_r, sims=sims_r))
    ref_spix = jnp.sqrt(jnp.mean((seg_r - sims_r) ** 2) + eps)
    assert jnp.allclose(loss_spix, ref_spix, rtol=1e-5, atol=1e-5), (loss_spix, ref_spix)

    # --- larger lane-aligned case: zero-copy slab, 2 balanced blocks, masked tail ---
    B2, C2, H2, W2 = 2, 4, 80, 100        # 64000 elems = 125 rows of 512 lanes
    kb = jax.random.split(k_img, 4)
    img2 = jax.random.normal(kb[0], (B2, C2, H2, W2), dtype=jnp.float32)
    deno2 = img2 + 0.05 * jax.random.normal(kb[1], (B2, C2, H2, W2), dtype=jnp.float32)
    seg2 = jax.random.normal(kb[2], (B2, C2, H2, W2), dtype=jnp.float32)
    sims2 = jax.random.normal(kb[3], (B2, C2, H2, W2), dtype=jnp.float32)

    ref0b = jnp.sqrt(jnp.mean((img2 - deno2) ** 2) + eps)
    ref1b = jnp.sqrt(jnp.mean((seg2 - sims2) ** 2) + eps)
    refb = 0.7 * ref0b + 0.3 * ref1b
    lossb = jax.block_until_ready(loss_fn(img2, seg2, deno=deno2, sims=sims2))
    assert jnp.allclose(lossb, refb, rtol=2e-5, atol=1e-5), (lossb, refb)

    print("KERNEL_OK")
</pallas_src>

<mosaic_0001>
module attributes {stable_mosaic.version = 11 : i64} {
  func.func @kernel(%arg0: i32, %arg1: memref<8x512xf32, #tpu.memory_space<vmem>>, %arg2: memref<8x512xf32, #tpu.memory_space<vmem>>, %arg3: memref<8x512xf32, #tpu.memory_space<vmem>>, %arg4: memref<8x512xf32, #tpu.memory_space<vmem>>, %arg5: memref<8x512xf32, #tpu.memory_space<vmem>>, %arg6: memref<8x512xf32, #tpu.memory_space<vmem>>) attributes {dimension_semantics = [#tpu.dimension_semantics<parallel>], iteration_bounds = array<i64: 1>, scalar_prefetch = 0 : i64, scratch_operands = 0 : i64, tpu.core_type = #tpu.core_type<tc>, window_params = [{transform_indices = @transform_0, window_bounds = array<i64: 8, 512>}, {transform_indices = @transform_1, window_bounds = array<i64: 8, 512>}, {transform_indices = @transform_2, window_bounds = array<i64: 8, 512>}, {transform_indices = @transform_3, window_bounds = array<i64: 8, 512>}, {transform_indices = @transform_4, window_bounds = array<i64: 8, 512>}, {transform_indices = @transform_5, window_bounds = array<i64: 8, 512>}]} {
    %cst = arith.constant 0.000000e+00 : f32
    %0 = vector.broadcast %cst : f32 to vector<8x512xf32>
    %c0_i32 = arith.constant 0 : i32
    %c8_i32 = arith.constant 8 : i32
    %1 = arith.muli %c0_i32, %c8_i32 : i32
    %2 = tpu.assume_multiple %1, 8 : i32
    %3 = arith.index_cast %2 : i32 to index
    %c0 = arith.constant 0 : index
    %4 = vector.load %arg1[%3, %c0] : memref<8x512xf32, #tpu.memory_space<vmem>>, vector<8x512xf32>
    %5 = arith.index_cast %2 : i32 to index
    %c0_0 = arith.constant 0 : index
    %6 = vector.load %arg2[%5, %c0_0] : memref<8x512xf32, #tpu.memory_space<vmem>>, vector<8x512xf32>
    %7 = arith.subf %4, %6 : vector<8x512xf32>
    %8 = arith.mulf %7, %7 : vector<8x512xf32>
    %9 = arith.addf %0, %8 : vector<8x512xf32>
    %10 = arith.index_cast %2 : i32 to index
    %c0_1 = arith.constant 0 : index
    %11 = vector.load %arg3[%10, %c0_1] : memref<8x512xf32, #tpu.memory_space<vmem>>, vector<8x512xf32>
    %12 = arith.index_cast %2 : i32 to index
    %c0_2 = arith.constant 0 : index
    %13 = vector.load %arg4[%12, %c0_2] : memref<8x512xf32, #tpu.memory_space<vmem>>, vector<8x512xf32>
    %14 = arith.subf %11, %13 : vector<8x512xf32>
    %15 = arith.mulf %14, %14 : vector<8x512xf32>
    %16 = arith.addf %0, %15 : vector<8x512xf32>
    %c1_i32 = arith.constant 1 : i32
    %c0_3 = arith.constant 0 : index
    %c0_4 = arith.constant 0 : index
    %17 = vector.load %arg5[%c0_3, %c0_4] : memref<8x512xf32, #tpu.memory_space<vmem>>, vector<8x512xf32>
    tpu.vector_store %arg5[%c0_3, %c0_4], %9 {strides = array<i32>} : memref<8x512xf32, #tpu.memory_space<vmem>>, vector<8x512xf32>,
    %c0_5 = arith.constant 0 : index
    %c0_6 = arith.constant 0 : index
    %18 = vector.load %arg6[%c0_5, %c0_6] : memref<8x512xf32, #tpu.memory_space<vmem>>, vector<8x512xf32>
    tpu.vector_store %arg6[%c0_5, %c0_6], %16 {strides = array<i32>} : memref<8x512xf32, #tpu.memory_space<vmem>>, vector<8x512xf32>,
    return
  }
  func.func @transform_0(%arg0: i32) -> (i32, i32) {
    %c0_i32 = arith.constant 0 : i32
    %c0_i32_0 = arith.constant 0 : i32
    return %arg0, %c0_i32 : i32, i32
  }
  func.func @transform_1(%arg0: i32) -> (i32, i32) {
    %c0_i32 = arith.constant 0 : i32
    %c0_i32_0 = arith.constant 0 : i32
    return %arg0, %c0_i32 : i32, i32
  }
  func.func @transform_2(%arg0: i32) -> (i32, i32) {
    %c0_i32 = arith.constant 0 : i32
    %c0_i32_0 = arith.constant 0 : i32
    return %arg0, %c0_i32 : i32, i32
  }
  func.func @transform_3(%arg0: i32) -> (i32, i32) {
    %c0_i32 = arith.constant 0 : i32
    %c0_i32_0 = arith.constant 0 : i32
    return %arg0, %c0_i32 : i32, i32
  }
  func.func @transform_4(%arg0: i32) -> (i32, i32) {
    %c0_i32 = arith.constant 0 : i32
    %c0_i32_0 = arith.constant 0 : i32
    return %arg0, %c0_i32 : i32, i32
  }
  func.func @transform_5(%arg0: i32) -> (i32, i32) {
    %c0_i32 = arith.constant 0 : i32
    %c0_i32_0 = arith.constant 0 : i32
    return %arg0, %c0_i32 : i32, i32
  }
}

</mosaic_0001>

<llo_original>
// kernel: tpu_custom_call.1
$region0: #{tpu_custom_call.1}
  #allocation0 [shape = 'u32[]', space=smem, size = 0x4, offset = 0x4, fixed_abs, tag = 'smem constant byte address 0x4 - core index']
  #allocation1 [shape = 'u32[144,128]{1,0:T(1,128)}', space=vmem, size = 0x12000, scoped, tag = 'internal scratch']
  %s0 = inlined_call_operand.hbm [shape: f32[8,512], index: 0, kind: input, shape index: {}]
  %s1 = inlined_call_operand.hbm [shape: f32[8,512], index: 1, kind: input, shape index: {}]
  %s2 = inlined_call_operand.hbm [shape: f32[8,512], index: 2, kind: input, shape index: {}]
  %s3 = inlined_call_operand.hbm [shape: f32[8,512], index: 3, kind: input, shape index: {}]
  %s4 = inlined_call_operand.hbm [shape: f32[8,512], index: 4, kind: output, shape index: {0}]
  %s5 = inlined_call_operand.hbm [shape: f32[8,512], index: 5, kind: output, shape index: {1}]
  %6 = xla_tuple %s4, %s5
  %s7 = sld [smem:[#allocation0]]
  $region50: #{tpu_custom_call.1} parent=0
    _
  %s9 = ssub.s32 1, %s7
  %s10 = scalar_select 0, %s9, %s7
  $region1: #{tpu_custom_call.1} parent=0
    #allocation2 [shape = 'u8[16384]{0}', space=vmem, size = 0x4000, scoped, tag = 'input window, operand 0, single buffered']
    #allocation3 [shape = 's32[1]{0}', space=sflag, size = 0x4, scoped, tag = 'scoped memory for tpu_custom_call.1']
    #allocation4 [shape = 's32[1]{0}', space=sflag, size = 0x4, scoped, tag = 'scoped memory for tpu_custom_call.1']
    #allocation5 [shape = 'u8[16384]{0}', space=vmem, size = 0x4000, scoped, tag = 'input window, operand 1, single buffered']
    #allocation6 [shape = 's32[1]{0}', space=sflag, size = 0x4, scoped, tag = 'scoped memory for tpu_custom_call.1']
    #allocation7 [shape = 'u8[16384]{0}', space=vmem, size = 0x4000, scoped, tag = 'input window, operand 2, single buffered']
    #allocation8 [shape = 'u8[16384]{0}', space=vmem, size = 0x4000, scoped, tag = 'input window, operand 3, single buffered']
    #allocation9 [shape = 's32[1]{0}', space=sflag, size = 0x4, scoped, tag = 'scoped memory for tpu_custom_call.1']
    #allocation10 [shape = 'u8[16384]{0}', space=vmem, size = 0x4000, scoped, tag = 'output window, operand 0, single buffered']
    #allocation11 [shape = 'u8[16384]{0}', space=vmem, size = 0x4000, scoped, tag = 'output window, operand 1, single buffered']
    #allocation12 [shape = 's32[1]{0}', space=sflag, size = 0x4, scoped, tag = 'scoped memory for tpu_custom_call.1']
    %11 = vsyncpa [#allocation3], 0
    %12 = vsyncpa [#allocation6], 0
    %13 = vsyncpa [#allocation9], 0
    %14 = vsyncpa [#allocation4], 0
    %15 = vsyncpa [#allocation12], 0
    // Predicated region
    $region2: #{tpu_custom_call.1} parent=1 // pred_check
      _
    $region3: #{tpu_custom_call.1} parent=1 // pred_check_branch
      %17 = sbr.rel (0) target = $region5
    $region4: #{tpu_custom_call.1} parent=1 // pred_region
      %s19 = ssub.s32 512, 512
      %20 = vsyncadd [#allocation3], %s19
      %s22 = sshll.u32 [#allocation2], 4
      %s23 = int_to_ptr.vmem [resolvable:$true] %s22
      %25 = dma.hbm_to_vmem [thread:$0]  %s0, 512, %s23, [#allocation3]
    $region5: #{tpu_custom_call.1} parent=1 // pred_fallthru
      _
    // Predicated region
    $region6: #{tpu_custom_call.1} parent=1 // pred_check
      _
    $region7: #{tpu_custom_call.1} parent=1 // pred_check_branch
      %27 = sbr.rel (0) target = $region9
    $region8: #{tpu_custom_call.1} parent=1 // pred_region
      %s29 = ssub.s32 512, 512
      %30 = vsyncadd [#allocation6], %s29
      %s32 = sshll.u32 [#allocation5], 4
      %s33 = int_to_ptr.vmem [resolvable:$true] %s32
      %35 = dma.hbm_to_vmem [thread:$0]  %s1, 512, %s33, [#allocation6]
    $region9: #{tpu_custom_call.1} parent=1 // pred_fallthru
      _
    // Predicated region
    $region10: #{tpu_custom_call.1} parent=1 // pred_check
      _
    $region11: #{tpu_custom_call.1} parent=1 // pred_check_branch
      %37 = sbr.rel (0) target = $region13
    $region12: #{tpu_custom_call.1} parent=1 // pred_region
      %s39 = ssub.s32 512, 512
      %40 = vsyncadd [#allocation6], %s39
      %s42 = sshll.u32 [#allocation7], 4
      %s43 = int_to_ptr.vmem [resolvable:$true] %s42
      %45 = dma.hbm_to_vmem [thread:$0]  %s2, 512, %s43, [#allocation6]
    $region13: #{tpu_custom_call.1} parent=1 // pred_fallthru
      _
    // Predicated region
    $region14: #{tpu_custom_call.1} parent=1 // pred_check
      _
    $region15: #{tpu_custom_call.1} parent=1 // pred_check_branch
      %47 = sbr.rel (0) target = $region17
    $region16: #{tpu_custom_call.1} parent=1 // pred_region
      %s49 = ssub.s32 512, 512
      %50 = vsyncadd [#allocation9], %s49
      %s52 = sshll.u32 [#allocation8], 4
      %s53 = int_to_ptr.vmem [resolvable:$true] %s52
      %55 = dma.hbm_to_vmem [thread:$0]  %s3, 512, %s53, [#allocation9]
    $region17: #{tpu_custom_call.1} parent=1 // pred_fallthru
      _
    // Predicated region
    $region18: #{tpu_custom_call.1} parent=1 // pred_check
      _
    $region19: #{tpu_custom_call.1} parent=1 // pred_check_branch
      %57 = sbr.rel (0) target = $region21
    $region20: #{tpu_custom_call.1} parent=1 // pred_region
      %58 = dma.done [#allocation3], 512
    $region21: #{tpu_custom_call.1} parent=1 // pred_fallthru
      _
    // Predicated region
    $region22: #{tpu_custom_call.1} parent=1 // pred_check
      _
    $region23: #{tpu_custom_call.1} parent=1 // pred_check_branch
      %60 = sbr.rel (0) target = $region25
    $region24: #{tpu_custom_call.1} parent=1 // pred_region
      %61 = dma.done [#allocation6], 512
    $region25: #{tpu_custom_call.1} parent=1 // pred_fallthru
      _
    // Predicated region
    $region26: #{tpu_custom_call.1} parent=1 // pred_check
      _
    $region27: #{tpu_custom_call.1} parent=1 // pred_check_branch
      %63 = sbr.rel (0) target = $region29
    $region28: #{tpu_custom_call.1} parent=1 // pred_region
      %64 = dma.done [#allocation6], 512
    $region29: #{tpu_custom_call.1} parent=1 // pred_fallthru
      _
    // Predicated region
    $region30: #{tpu_custom_call.1} parent=1 // pred_check
      _
    $region31: #{tpu_custom_call.1} parent=1 // pred_check_branch
      %66 = sbr.rel (0) target = $region33
    $region32: #{tpu_custom_call.1} parent=1 // pred_region
      %67 = dma.done [#allocation9], 512
    $region33: #{tpu_custom_call.1} parent=1 // pred_fallthru
      _
    %s68 = smul.u32 0, 4
    %s69 = smul.addr %s68, 8
    %s70 = scalar_lea.vmem [#allocation2], %s69
    %v71 = vld [vmem:[%s70] sm:$0xff]
    %v72 = vld [vmem:[%s70 + $0x8] sm:$0xff]
    %v73 = vld [vmem:[%s70 + $0x10] sm:$0xff]
    %v74 = vld [vmem:[%s70 + $0x18] sm:$0xff]
    %s75 = smul.addr %s68, 8
    %s76 = scalar_lea.vmem [#allocation5], %s75
    %v77 = vld [vmem:[%s76] sm:$0xff]
    %v78 = vld [vmem:[%s76 + $0x8] sm:$0xff]
    %v79 = vld [vmem:[%s76 + $0x10] sm:$0xff]
    %v80 = vld [vmem:[%s76 + $0x18] sm:$0xff]
    %v81 = vsub.f32 %v71, %v77
    %v82 = vsub.f32 %v72, %v78
    %v83 = vsub.f32 %v73, %v79
    %v84 = vsub.f32 %v74, %v80
    %v85 = vmul.f32 %v81, %v81
    %v86 = vmul.f32 %v82, %v82
    %v87 = vmul.f32 %v83, %v83
    %v88 = vmul.f32 %v84, %v84
    %v89 = vadd.f32 %v85, 0.0
    %v90 = vadd.f32 %v86, 0.0
    %v91 = vadd.f32 %v87, 0.0
    %v92 = vadd.f32 %v88, 0.0
    %s93 = smul.addr %s68, 8
    %s94 = scalar_lea.vmem [#allocation7], %s93
    %v95 = vld [vmem:[%s94] sm:$0xff]
    %v96 = vld [vmem:[%s94 + $0x8] sm:$0xff]
    %v97 = vld [vmem:[%s94 + $0x10] sm:$0xff]
    %v98 = vld [vmem:[%s94 + $0x18] sm:$0xff]
    %s99 = smul.addr %s68, 8
    %s100 = scalar_lea.vmem [#allocation8], %s99
    %v101 = vld [vmem:[%s100] sm:$0xff]
    %v102 = vld [vmem:[%s100 + $0x8] sm:$0xff]
    %v103 = vld [vmem:[%s100 + $0x10] sm:$0xff]
    %v104 = vld [vmem:[%s100 + $0x18] sm:$0xff]
    %v105 = vsub.f32 %v95, %v101
    %v106 = vsub.f32 %v96, %v102
    %v107 = vsub.f32 %v97, %v103
    %v108 = vsub.f32 %v98, %v104
    %v109 = vmul.f32 %v105, %v105
    %v110 = vmul.f32 %v106, %v106
    %v111 = vmul.f32 %v107, %v107
    %v112 = vmul.f32 %v108, %v108
    %v113 = vadd.f32 %v109, 0.0
    %v114 = vadd.f32 %v110, 0.0
    %v115 = vadd.f32 %v111, 0.0
    %v116 = vadd.f32 %v112, 0.0
    %117 = vst [vmem:[#allocation10] sm:$0xff] %v89
    %118 = vst [vmem:[#allocation10 + $0x8] sm:$0xff] %v90
    %119 = vst [vmem:[#allocation10 + $0x10] sm:$0xff] %v91
    %120 = vst [vmem:[#allocation10 + $0x18] sm:$0xff] %v92
    %121 = vst [vmem:[#allocation11] sm:$0xff] %v113
    %122 = vst [vmem:[#allocation11 + $0x8] sm:$0xff] %v114
    %123 = vst [vmem:[#allocation11 + $0x10] sm:$0xff] %v115
    %124 = vst [vmem:[#allocation11 + $0x18] sm:$0xff] %v116
    // Predicated region
    $region34: #{tpu_custom_call.1} parent=1 // pred_check
      _
    $region35: #{tpu_custom_call.1} parent=1 // pred_check_branch
      %126 = sbr.rel (0) target = $region37
    $region36: #{tpu_custom_call.1} parent=1 // pred_region
      %s128 = ssub.s32 512, 512
      %129 = vsyncadd [#allocation4], %s128
      %s131 = sshll.u32 [#allocation10], 4
      %s132 = int_to_ptr.vmem [resolvable:$true] %s131
      %134 = dma.vmem_to_hbm [thread:$0]  %s132, 512, %s4, [#allocation4]
    $region37: #{tpu_custom_call.1} parent=1 // pred_fallthru
      _
    // Predicated region
    $region38: #{tpu_custom_call.1} parent=1 // pred_check
      _
    $region39: #{tpu_custom_call.1} parent=1 // pred_check_branch
      %136 = sbr.rel (0) target = $region41
    $region40: #{tpu_custom_call.1} parent=1 // pred_region
      %s138 = ssub.s32 512, 512
      %139 = vsyncadd [#allocation12], %s138
      %s141 = sshll.u32 [#allocation11], 4
      %s142 = int_to_ptr.vmem [resolvable:$true] %s141
      %144 = dma.vmem_to_hbm [thread:$0]  %s142, 512, %s5, [#allocation12]
    $region41: #{tpu_custom_call.1} parent=1 // pred_fallthru
      _
    // Predicated region
    $region42: #{tpu_custom_call.1} parent=1 // pred_check
      _
    $region43: #{tpu_custom_call.1} parent=1 // pred_check_branch
      %146 = sbr.rel (0) target = $region45
    $region44: #{tpu_custom_call.1} parent=1 // pred_region
      %147 = dma.done [#allocation4], 512
    $region45: #{tpu_custom_call.1} parent=1 // pred_fallthru
      _
    // Predicated region
    $region46: #{tpu_custom_call.1} parent=1 // pred_check
      _
    $region47: #{tpu_custom_call.1} parent=1 // pred_check_branch
      %149 = sbr.rel (0) target = $region49
    $region48: #{tpu_custom_call.1} parent=1 // pred_region
      %150 = dma.done [#allocation12], 512
    $region49: #{tpu_custom_call.1} parent=1 // pred_fallthru
      _
    %151 = vsyncpa [#allocation3], 1
    %152 = vsyncpa [#allocation6], 1
    %153 = vsyncpa [#allocation9], 1
    %154 = vsyncpa [#allocation4], 1
    %155 = vsyncpa [#allocation12], 1

</llo_original>
